<compile_context>
chip_gen: v7x
topology: tpu7x:2x2x1
jax: 0.10.0
libtpu: 0.0.40
codegen_flags: <defaults>
</compile_context>

<pallas_src>
import functools

import jax
import jax.numpy as jnp
from jax.experimental import pallas as pl
from jax.experimental.pallas import tpu as pltpu


def _round_up(x, m):
    return ((x + m - 1) // m) * m


def _vmem_capacity_bytes():
    try:
        cap = getattr(pltpu.get_tpu_info(), "vmem_capacity_bytes", None)
        if cap:
            return int(cap)
    except Exception:
        pass
    return 64 * 1024 * 1024  # conservative fallback: v7x per-TC VMEM


def gated_attn_kernel(x_ref, wab_ref, bab_ref, wc_ref, bc_ref, out_ref, *, d):
    x = x_ref[...]                                        # (TN, L)   bf16
    # One fused MXU matmul for both projections: columns [0, d) -> "a" branch,
    # columns [d, 2d) -> "b" branch.  d is a multiple of 128 (lane aligned).
    ab = (jnp.dot(x, wab_ref[...], preferred_element_type=jnp.float32)
          + bab_ref[...])                                 # (TN, 2*Dp) f32
    a = jnp.tanh(ab[:, :d])                               # (TN, Dp)   f32
    b = jax.nn.sigmoid(ab[:, d:])                         # (TN, Dp)   f32
    A = a * b                                             # (TN, Dp)   f32
    # F.normalize + Linear(D, C), reordered:
    #   (A / max(||A||, 1e-12)) @ Wc + bc
    #     == (A @ Wc) * rsqrt(max(sum(A^2), 1e-24)) + bc
    # (per-row scalar commutes with the matmul over D).
    ss = jnp.sum(A * A, axis=-1, keepdims=True)           # (TN, 1) XLU reduce
    proj = jnp.dot(A.astype(jnp.bfloat16), wc_ref[...],
                   preferred_element_type=jnp.float32)    # (TN, Cp) MXU
    inv_norm = jax.lax.rsqrt(jnp.maximum(ss, 1e-24))      # EUP rsqrt
    out_ref[...] = proj * inv_norm + bc_ref[...]          # (TN, Cp) f32


def attn_net_gated(x, wa, ba, wb, bb, wc, bc, *, tile_n=1024):
    """Returns (A, x) just like the PyTorch module's forward.

    Weights are stored pre-transposed as (in, out): wa/wb (L, D), wc (D, C).
    """
    N, L = x.shape
    D = wa.shape[1]
    n_classes = wc.shape[1]
    f32, bf16 = jnp.float32, jnp.bfloat16

    # Lane-pad the hidden and class dims (weights only; x stays unpadded —
    # its BlockSpec uses the full L as last block dim, which is always legal).
    Dp = _round_up(D, 128)
    Cp = _round_up(n_classes, 128)

    # VMEM budget per generation: ~100 MiB on v5e/v6e (128 MiB physical),
    # ~56 MiB on v7x (64 MiB per TC).
    vmem_cap = _vmem_capacity_bytes()
    vmem_limit = min(max(vmem_cap - 8 * 1024 * 1024, 32 * 1024 * 1024),
                     100 * 1024 * 1024)
    vmem_budget = int(vmem_limit * 0.8)

    # Row tile: multiple of 8; at least 2 grid steps when N allows (keeps both
    # v7x TensorCores busy); clamped so the working set fits VMEM.
    tile_n = max(8, (min(tile_n, _round_up((N + 1) // 2, 8)) // 8) * 8)

    def _tile_bytes(tn):
        x_buf = 2 * tn * L * 2                        # double-buffered bf16 x
        out_buf = 2 * tn * Cp * 4                     # double-buffered f32 out
        w_buf = 2 * ((L * 2 * Dp + Dp * Cp) * 2 + (2 * Dp + Cp) * 4)
        inter = 3 * tn * 2 * Dp * 4                   # ab / a*b f32 temporaries
        return x_buf + out_buf + w_buf + inter

    while tile_n > 8 and _tile_bytes(tile_n) > vmem_budget:
        tile_n = max(8, ((tile_n // 2) // 8) * 8)

    grid = (pl.cdiv(N, tile_n),)

    # Fused + zero-padded parameters (zero padding is a mathematical no-op:
    # padded hidden units give tanh(0)*sigmoid(0)=0, contributing nothing to
    # the L2 norm or the final projection; padded class columns are sliced).
    wab = jnp.zeros((L, 2 * Dp), bf16)
    wab = wab.at[:, :D].set(wa.astype(bf16))
    wab = wab.at[:, Dp:Dp + D].set(wb.astype(bf16))
    bab = jnp.zeros((1, 2 * Dp), f32)
    bab = bab.at[:, :D].set(ba.reshape(1, -1).astype(f32))
    bab = bab.at[:, Dp:Dp + D].set(bb.reshape(1, -1).astype(f32))
    wc_p = jnp.zeros((Dp, Cp), bf16).at[:D, :n_classes].set(wc.astype(bf16))
    bc_p = jnp.zeros((1, Cp), f32).at[:, :n_classes].set(
        bc.reshape(1, -1).astype(f32))

    # MXU operands in bf16.  Ideally x already arrives in bf16 from the
    # producing layer (then this cast is a no-op and no extra HBM pass).
    x_in = x if x.dtype == bf16 else x.astype(bf16)

    kernel = functools.partial(gated_attn_kernel, d=Dp)

    A = pl.pallas_call(
        kernel,
        out_shape=jax.ShapeDtypeStruct((N, Cp), f32),
        grid_spec=pltpu.PrefetchScalarGridSpec(
            num_scalar_prefetch=0,
            grid=grid,
            in_specs=[
                pl.BlockSpec((tile_n, L), lambda i: (i, 0)),     # x tile (bf16)
                pl.BlockSpec((L, 2 * Dp), lambda i: (0, 0)),     # Wa|Wb fused
                pl.BlockSpec((1, 2 * Dp), lambda i: (0, 0)),     # ba|bb fused
                pl.BlockSpec((Dp, Cp), lambda i: (0, 0)),        # Wc
                pl.BlockSpec((1, Cp), lambda i: (0, 0)),         # bc
            ],
            out_specs=pl.BlockSpec((tile_n, Cp), lambda i: (i, 0)),
        ),
        compiler_params=pltpu.CompilerParams(
            dimension_semantics=("parallel",),
            vmem_limit_bytes=vmem_limit,
        ),
    )(x_in, wab, bab, wc_p, bc_p)

    return A[:, :n_classes], x


def _reference(x, wa, ba, wb, bb, wc, bc):
    a = jnp.tanh(x @ wa + ba)
    b = jax.nn.sigmoid(x @ wb + bb)
    A = a * b
    n = jnp.sqrt(jnp.sum(A * A, axis=-1, keepdims=True))
    A = A / jnp.maximum(n, 1e-12)
    return A @ wc + bc


if __name__ == "__main__":
    # Small shapes consistent with the module (L=input dim, D=hidden, classes).
    # N=20 deliberately not a multiple of 8 to exercise the partial-last-block
    # path; L=64 / D=32 exercise the unpadded-L and lane-padded-D paths.
    N, L, D, n_classes = 20, 64, 32, 1

    key = jax.random.PRNGKey(0)
    kx, kwa, kba, kwb, kbb, kwc, kbc = jax.random.split(key, 7)

    x = jax.random.normal(kx, (N, L), dtype=jnp.float32)

    # Deterministic synthetic parameters; shapes match nn.Linear weights,
    # stored transposed as (in, out).
    wa = jax.random.normal(kwa, (L, D), dtype=jnp.float32) * 0.05
    ba = jax.random.normal(kba, (1, D), dtype=jnp.float32) * 0.05
    wb = jax.random.normal(kwb, (L, D), dtype=jnp.float32) * 0.05
    bb = jax.random.normal(kbb, (1, D), dtype=jnp.float32) * 0.05
    wc = jax.random.normal(kwc, (D, n_classes), dtype=jnp.float32) * 0.05
    bc = jax.random.normal(kbc, (1, n_classes), dtype=jnp.float32) * 0.05

    A, x_out = attn_net_gated(x, wa, ba, wb, bb, wc, bc)
    A = jax.block_until_ready(A)
    x_out = jax.block_until_ready(x_out)

    # Sanity check against pure-JAX f32 reference (bf16 MXU operands in the
    # kernel => compare at bf16-level tolerance).
    A_ref = _reference(x, wa, ba, wb, bb, wc, bc)
    assert A.shape == (N, n_classes)
    assert x_out.shape == x.shape and x_out.dtype == x.dtype
    assert jnp.allclose(A, A_ref, atol=1e-2, rtol=1e-2), float(
        jnp.max(jnp.abs(A - A_ref)))

    print("KERNEL_OK")
</pallas_src>

<mosaic_0001>
module attributes {stable_mosaic.version = 11 : i64} {
  func.func @gated_attn_kernel(%arg0: i32, %arg1: memref<16x64xbf16, #tpu.memory_space<vmem>>, %arg2: memref<64x256xbf16, #tpu.memory_space<vmem>>, %arg3: memref<1x256xf32, #tpu.memory_space<vmem>>, %arg4: memref<128x128xbf16, #tpu.memory_space<vmem>>, %arg5: memref<1x128xf32, #tpu.memory_space<vmem>>, %arg6: memref<16x128xf32, #tpu.memory_space<vmem>>) attributes {dimension_semantics = [#tpu.dimension_semantics<parallel>], iteration_bounds = array<i64: 2>, scalar_prefetch = 0 : i64, scratch_operands = 0 : i64, tpu.core_type = #tpu.core_type<tc>, window_params = [{transform_indices = @transform_0, window_bounds = array<i64: 16, 64>}, {pipeline_mode = #tpu.pipeline_mode<synchronous>, transform_indices = @transform_1, window_bounds = array<i64: 64, 256>}, {pipeline_mode = #tpu.pipeline_mode<synchronous>, transform_indices = @transform_2, window_bounds = array<i64: 1, 256>}, {pipeline_mode = #tpu.pipeline_mode<synchronous>, transform_indices = @transform_3, window_bounds = array<i64: 128, 128>}, {pipeline_mode = #tpu.pipeline_mode<synchronous>, transform_indices = @transform_4, window_bounds = array<i64: 1, 128>}, {transform_indices = @transform_5, window_bounds = array<i64: 16, 128>}]} {
    %c0 = arith.constant 0 : index
    %c0_0 = arith.constant 0 : index
    %0 = vector.load %arg1[%c0, %c0_0] : memref<16x64xbf16, #tpu.memory_space<vmem>>, vector<16x64xbf16>
    %c0_1 = arith.constant 0 : index
    %c0_2 = arith.constant 0 : index
    %1 = vector.load %arg2[%c0_1, %c0_2] : memref<64x256xbf16, #tpu.memory_space<vmem>>, vector<64x256xbf16>
    %cst = arith.constant dense<0.000000e+00> : vector<16x256xf32>
    %2 = tpu.matmul %0, %1, %cst {dimension_numbers = #tpu.dot_dimension_numbers<[1], [0], [0], [1], [0, 0, 1, 1], [], []>} : vector<16x64xbf16>, vector<64x256xbf16>, vector<16x256xf32> -> vector<16x256xf32>
    %c0_3 = arith.constant 0 : index
    %c0_4 = arith.constant 0 : index
    %3 = vector.load %arg3[%c0_3, %c0_4] : memref<1x256xf32, #tpu.memory_space<vmem>>, vector<1x256xf32>
    %4 = vector.broadcast %3 : vector<1x256xf32> to vector<16x256xf32>
    %5 = arith.addf %2, %4 : vector<16x256xf32>
    %6 = vector.extract_strided_slice %5 {offsets = [0, 0], sizes = [16, 128], strides = [1, 1]} : vector<16x256xf32> to vector<16x128xf32>
    %7 = math.tanh %6 : vector<16x128xf32>
    %8 = vector.extract_strided_slice %5 {offsets = [0, 128], sizes = [16, 128], strides = [1, 1]} : vector<16x256xf32> to vector<16x128xf32>
    %9 = arith.negf %8 : vector<16x128xf32>
    %10 = math.exp %9 : vector<16x128xf32>
    %cst_5 = arith.constant 1.000000e+00 : f32
    %11 = vector.broadcast %cst_5 : f32 to vector<16x128xf32>
    %12 = arith.addf %11, %10 : vector<16x128xf32>
    %13 = arith.divf %11, %12 : vector<16x128xf32>
    %14 = arith.mulf %7, %13 : vector<16x128xf32>
    %15 = arith.mulf %14, %14 : vector<16x128xf32>
    %cst_6 = arith.constant dense<0.000000e+00> : vector<16xf32>
    %16 = vector.multi_reduction <add>, %15, %cst_6 [1] : vector<16x128xf32> to vector<16xf32>
    %17 = vector.shape_cast %16 : vector<16xf32> to vector<16x1xf32>
    %18 = arith.truncf %14 : vector<16x128xf32> to vector<16x128xbf16>
    %c0_7 = arith.constant 0 : index
    %c0_8 = arith.constant 0 : index
    %19 = vector.load %arg4[%c0_7, %c0_8] : memref<128x128xbf16, #tpu.memory_space<vmem>>, vector<128x128xbf16>
    %cst_9 = arith.constant dense<0.000000e+00> : vector<16x128xf32>
    %20 = tpu.matmul %18, %19, %cst_9 {dimension_numbers = #tpu.dot_dimension_numbers<[1], [0], [0], [1], [0, 0, 1, 1], [], []>} : vector<16x128xbf16>, vector<128x128xbf16>, vector<16x128xf32> -> vector<16x128xf32>
    %cst_10 = arith.constant 1.000000e-24 : f32
    %21 = vector.broadcast %cst_10 : f32 to vector<16x1xf32>
    %22 = arith.maximumf %17, %21 : vector<16x1xf32>
    %23 = math.rsqrt %22 : vector<16x1xf32>
    %24 = vector.broadcast %23 : vector<16x1xf32> to vector<16x128xf32>
    %25 = arith.mulf %20, %24 : vector<16x128xf32>
    %c0_11 = arith.constant 0 : index
    %c0_12 = arith.constant 0 : index
    %26 = vector.load %arg5[%c0_11, %c0_12] : memref<1x128xf32, #tpu.memory_space<vmem>>, vector<1x128xf32>
    %27 = vector.broadcast %26 : vector<1x128xf32> to vector<16x128xf32>
    %28 = arith.addf %25, %27 : vector<16x128xf32>
    %c0_13 = arith.constant 0 : index
    %c0_14 = arith.constant 0 : index
    %29 = vector.load %arg6[%c0_13, %c0_14] : memref<16x128xf32, #tpu.memory_space<vmem>>, vector<16x128xf32>
    tpu.vector_store %arg6[%c0_13, %c0_14], %28 {strides = array<i32>} : memref<16x128xf32, #tpu.memory_space<vmem>>, vector<16x128xf32>,
    return
  }
  func.func @transform_0(%arg0: i32) -> (i32, i32) {
    %c0_i32 = arith.constant 0 : i32
    %c0_i32_0 = arith.constant 0 : i32
    return %arg0, %c0_i32 : i32, i32
  }
  func.func @transform_1(%arg0: i32) -> (i32, i32) {
    %c0_i32 = arith.constant 0 : i32
    %c0_i32_0 = arith.constant 0 : i32
    %c0_i32_1 = arith.constant 0 : i32
    return %c0_i32, %c0_i32_0 : i32, i32
  }
  func.func @transform_2(%arg0: i32) -> (i32, i32) {
    %c0_i32 = arith.constant 0 : i32
    %c0_i32_0 = arith.constant 0 : i32
    %c0_i32_1 = arith.constant 0 : i32
    return %c0_i32, %c0_i32_0 : i32, i32
  }
  func.func @transform_3(%arg0: i32) -> (i32, i32) {
    %c0_i32 = arith.constant 0 : i32
    %c0_i32_0 = arith.constant 0 : i32
    %c0_i32_1 = arith.constant 0 : i32
    return %c0_i32, %c0_i32_0 : i32, i32
  }
  func.func @transform_4(%arg0: i32) -> (i32, i32) {
    %c0_i32 = arith.constant 0 : i32
    %c0_i32_0 = arith.constant 0 : i32
    %c0_i32_1 = arith.constant 0 : i32
    return %c0_i32, %c0_i32_0 : i32, i32
  }
  func.func @transform_5(%arg0: i32) -> (i32, i32) {
    %c0_i32 = arith.constant 0 : i32
    %c0_i32_0 = arith.constant 0 : i32
    return %arg0, %c0_i32 : i32, i32
  }
}

</mosaic_0001>

<llo_original>
// kernel: tpu_custom_call.1
$region0: #{tpu_custom_call.1}
  #allocation0 [shape = 'u32[]', space=smem, size = 0x4, offset = 0x4, fixed_abs, tag = 'smem constant byte address 0x4 - core index']
  #allocation1 [shape = 'u32[144,128]{1,0:T(1,128)}', space=vmem, size = 0x12000, scoped, tag = 'internal scratch']
  %s0 = inlined_call_operand.hbm [shape: bf16[20,64], index: 0, kind: input, shape index: {}]
  %s1 = inlined_call_operand.hbm [shape: bf16[64,256], index: 1, kind: input, shape index: {}]
  %s2 = inlined_call_operand.vmem [shape: f32[1,256], index: 2, kind: input, shape index: {}]
  %s3 = inlined_call_operand.hbm [shape: bf16[128,128], index: 3, kind: input, shape index: {}]
  %s4 = inlined_call_operand.vmem [shape: f32[1,128], index: 4, kind: input, shape index: {}]
  %s5 = inlined_call_operand.hbm [shape: f32[20,128], index: 5, kind: output, shape index: {}]
  %s6 = sld [smem:[#allocation0]]
  $region65: #{tpu_custom_call.1} parent=0
    _
  %s8 = ssub.s32 1, %s6
  %s9 = scalar_select 0, %s8, %s6
  $region1: #{tpu_custom_call.1} parent=0
    #allocation2 [shape = 'u8[8192]{0}', space=vmem, size = 0x2000, scoped, tag = 'input window, operand 0']
    #allocation3 [shape = 's32[2]{0}', space=sflag, size = 0x8, scoped, tag = 'scoped memory for tpu_custom_call.1']
    #allocation4 [shape = 's32[2]{0}', space=sflag, size = 0x8, scoped, tag = 'scoped memory for tpu_custom_call.1']
    #allocation5 [shape = 'u8[32768]{0}', space=vmem, size = 0x8000, scoped, tag = 'input window, operand 1, single buffered']
    #allocation6 [shape = 's32[1]{0}', space=sflag, size = 0x4, scoped, tag = 'scoped memory for tpu_custom_call.1']
    #allocation7 [shape = 'u8[32768]{0}', space=vmem, size = 0x8000, scoped, tag = 'input window, operand 3, single buffered']
    #allocation8 [shape = 'u8[16384]{0}', space=vmem, size = 0x4000, scoped, tag = 'output window, operand 0']
    %10 = vsyncpa [#allocation3], 0
    %s11 = scalar_lea.sflag [#allocation3], 1
    %12 = vsyncpa %s11, 0
    %13 = vsyncpa [#allocation6], 0
    %14 = vsyncpa [#allocation4], 0
    %s15 = scalar_lea.sflag [#allocation4], 1
    %16 = vsyncpa %s15, 0
    loop: start=0, step=1, limit=4
    $region2: #{tpu_custom_call.1} parent=1 // loop_pre_header
      _
    $region3: #{tpu_custom_call.1} parent=1 // loop_header
      %s18 = sphi 0, %s22
      %p19 = scmp.ge.s32.totalorder %s18, 4
      %s28 = sphi 0, %s30
      %s31 = sphi 0, %s28
      %s32 = sphi 0, %s31
      %s48 = sphi 0, %s32
      %s52 = sphi 0, %s52
      %s54 = sphi 0, %s52
      %s55 = sphi 0, %s54
      %s69 = sphi 0, %s55
      %s73 = sphi 0, %s73
      %s75 = sphi 0, %s73
      %s76 = sphi 0, %s75
      %s90 = sphi 0, %s76
      %s94 = sphi 0, %s94
      %s96 = sphi 0, %s94
      %s97 = sphi 0, %s96
      %s111 = sphi 0, %s97
      %s115 = sphi 0, %s115
      %s117 = sphi 0, %s115
      %s118 = sphi 0, %s117
      %s132 = sphi 0, %s118
      %s138 = sphi 0, %s140
      %s141 = sphi 0, %s138
      %s142 = sphi 0, %s141
      %s158 = sphi 0, %s142
    $region4: #{tpu_custom_call.1} parent=1 // loop_header_branch
      %21 = sbr.rel (%p19) target = $region8
    $region5: #{tpu_custom_call.1} parent=1 // loop_body
      %s23 = ssub.s32 %s18, 1
      %s24 = ssub.s32 %s18, 2
      %s25 = sadd.s32 %s18, 1
      %s26 = ssub.s32 %s18, %s25
      %p27 = scmp.eq.s32.totalorder %s26, 0
      %s29 = sadd.s32 %s28, 1
      %s30 = scalar_select %p27, %s28, %s29
      %p33 = pneg %p27
      %p34 = scmp.eq.s32.totalorder %s18, 1
      %p35 = por %p33, %p34
      %p36 = scmp.ne.s32.totalorder %s28, %s31
      %p37 = scmp.eq.s32.totalorder %s18, 0
      %p38 = por %p36, %p37
      %p39 = scmp.ne.s32.totalorder %s28, %s31
      %p40 = scmp.eq.s32.totalorder %s23, 1
      %p41 = por %p39, %p40
      %p42 = scmp.ne.s32.totalorder %s31, %s32
      %p43 = scmp.eq.s32.totalorder %s23, 0
      %p44 = por %p42, %p43
      %p45 = scmp.ne.s32.totalorder %s31, %s32
      %p46 = scmp.eq.s32.totalorder %s24, 1
      %p47 = por %p45, %p46
      %p49 = scmp.ne.s32.totalorder %s32, %s48
      %p50 = scmp.eq.s32.totalorder %s24, 0
      %p51 = por %p49, %p50
      %s53 = sadd.s32 %s52, 1
      %p56 = scmp.eq.s32.totalorder %s18, 1
      %p57 = scmp.ne.s32.totalorder %s52, %s54
      %p58 = scmp.eq.s32.totalorder %s18, 0
      %p59 = por %p57, %p58
      %p60 = scmp.ne.s32.totalorder %s52, %s54
      %p61 = scmp.eq.s32.totalorder %s23, 1
      %p62 = por %p60, %p61
      %p63 = scmp.ne.s32.totalorder %s54, %s55
      %p64 = scmp.eq.s32.totalorder %s23, 0
      %p65 = por %p63, %p64
      %p66 = scmp.ne.s32.totalorder %s54, %s55
      %p67 = scmp.eq.s32.totalorder %s24, 1
      %p68 = por %p66, %p67
      %p70 = scmp.ne.s32.totalorder %s55, %s69
      %p71 = scmp.eq.s32.totalorder %s24, 0
      %p72 = por %p70, %p71
      %s74 = sadd.s32 %s73, 1
      %p77 = scmp.eq.s32.totalorder %s18, 1
      %p78 = scmp.ne.s32.totalorder %s73, %s75
      %p79 = scmp.eq.s32.totalorder %s18, 0
      %p80 = por %p78, %p79
      %p81 = scmp.ne.s32.totalorder %s73, %s75
      %p82 = scmp.eq.s32.totalorder %s23, 1
      %p83 = por %p81, %p82
      %p84 = scmp.ne.s32.totalorder %s75, %s76
      %p85 = scmp.eq.s32.totalorder %s23, 0
      %p86 = por %p84, %p85
      %p87 = scmp.ne.s32.totalorder %s75, %s76
      %p88 = scmp.eq.s32.totalorder %s24, 1
      %p89 = por %p87, %p88
      %p91 = scmp.ne.s32.totalorder %s76, %s90
      %p92 = scmp.eq.s32.totalorder %s24, 0
      %p93 = por %p91, %p92
      %s95 = sadd.s32 %s94, 1
      %p98 = scmp.eq.s32.totalorder %s18, 1
      %p99 = scmp.ne.s32.totalorder %s94, %s96
      %p100 = scmp.eq.s32.totalorder %s18, 0
      %p101 = por %p99, %p100
      %p102 = scmp.ne.s32.totalorder %s94, %s96
      %p103 = scmp.eq.s32.totalorder %s23, 1
      %p104 = por %p102, %p103
      %p105 = scmp.ne.s32.totalorder %s96, %s97
      %p106 = scmp.eq.s32.totalorder %s23, 0
      %p107 = por %p105, %p106
      %p108 = scmp.ne.s32.totalorder %s96, %s97
      %p109 = scmp.eq.s32.totalorder %s24, 1
      %p110 = por %p108, %p109
      %p112 = scmp.ne.s32.totalorder %s97, %s111
      %p113 = scmp.eq.s32.totalorder %s24, 0
      %p114 = por %p112, %p113
      %s116 = sadd.s32 %s115, 1
      %p119 = scmp.eq.s32.totalorder %s18, 1
      %p120 = scmp.ne.s32.totalorder %s115, %s117
      %p121 = scmp.eq.s32.totalorder %s18, 0
      %p122 = por %p120, %p121
      %p123 = scmp.ne.s32.totalorder %s115, %s117
      %p124 = scmp.eq.s32.totalorder %s23, 1
      %p125 = por %p123, %p124
      %p126 = scmp.ne.s32.totalorder %s117, %s118
      %p127 = scmp.eq.s32.totalorder %s23, 0
      %p128 = por %p126, %p127
      %p129 = scmp.ne.s32.totalorder %s117, %s118
      %p130 = scmp.eq.s32.totalorder %s24, 1
      %p131 = por %p129, %p130
      %p133 = scmp.ne.s32.totalorder %s118, %s132
      %p134 = scmp.eq.s32.totalorder %s24, 0
      %p135 = por %p133, %p134
      %s136 = ssub.s32 %s18, %s25
      %p137 = scmp.eq.s32.totalorder %s136, 0
      %s139 = sadd.s32 %s138, 1
      %s140 = scalar_select %p137, %s138, %s139
      %p143 = pneg %p137
      %p144 = scmp.eq.s32.totalorder %s18, 1
      %p145 = por %p143, %p144
      %p146 = scmp.ne.s32.totalorder %s138, %s141
      %p147 = scmp.eq.s32.totalorder %s18, 0
      %p148 = por %p146, %p147
      %p149 = scmp.ne.s32.totalorder %s138, %s141
      %p150 = scmp.eq.s32.totalorder %s23, 1
      %p151 = por %p149, %p150
      %p152 = scmp.ne.s32.totalorder %s141, %s142
      %p153 = scmp.eq.s32.totalorder %s23, 0
      %p154 = por %p152, %p153
      %p155 = scmp.ne.s32.totalorder %s141, %s142
      %p156 = scmp.eq.s32.totalorder %s24, 1
      %p157 = por %p155, %p156
      %p159 = scmp.ne.s32.totalorder %s142, %s158
      %p160 = scmp.eq.s32.totalorder %s24, 0
      %p161 = por %p159, %p160
      %p162 = scmp.le.s32.totalorder 1, %s18
      %p163 = scmp.lt.s32.totalorder %s18, 3
      %p164 = pnand %p162, %p163
      %p165 = pneg %p164
      // Predicated region
      $region9: #{tpu_custom_call.1} parent=5 // pred_check
        _
      $region10: #{tpu_custom_call.1} parent=5 // pred_check_branch
        %167 = sbr.rel (%p164) target = $region12
      $region11: #{tpu_custom_call.1} parent=5 // pred_region
        %s168 = ssub.s32 %s18, 1
        // Predicated region
        $region13: #{tpu_custom_call.1} parent=11 // pred_check
          %p169 = pneg %p65
        $region14: #{tpu_custom_call.1} parent=11 // pred_check_branch
          %171 = sbr.rel (%p169) target = $region16
        $region15: #{tpu_custom_call.1} parent=11 // pred_region
          %s173 = ssub.s32 1024, 1024
          %174 = vsyncadd [#allocation6], %s173
          %s175 = sshll.u32 [#allocation5], 4
          %s176 = int_to_ptr.vmem [resolvable:$true] %s175
          %181 = dma.hbm_to_vmem [thread:$0]  %s1, 1024, %s176, [#allocation6], 128, 128, 8
        $region16: #{tpu_custom_call.1} parent=11 // pred_fallthru
          _
        // Predicated region
        $region17: #{tpu_custom_call.1} parent=11 // pred_check
          %p182 = pneg %p86
        $region18: #{tpu_custom_call.1} parent=11 // pred_check_branch
          %184 = sbr.rel (%p182) target = $region20
        $region19: #{tpu_custom_call.1} parent=11 // pred_region
          _
        $region20: #{tpu_custom_call.1} parent=11 // pred_fallthru
          _
        // Predicated region
        $region21: #{tpu_custom_call.1} parent=11 // pred_check
          %p185 = pneg %p107
        $region22: #{tpu_custom_call.1} parent=11 // pred_check_branch
          %187 = sbr.rel (%p185) target = $region24
        $region23: #{tpu_custom_call.1} parent=11 // pred_region
          %s189 = ssub.s32 1024, 1024
          %190 = vsyncadd [#allocation6], %s189
          %s191 = sshll.u32 [#allocation7], 4
          %s192 = int_to_ptr.vmem [resolvable:$true] %s191
          %197 = dma.hbm_to_vmem [thread:$0]  %s3, 1024, %s192, [#allocation6], 64, 64, 4
        $region24: #{tpu_custom_call.1} parent=11 // pred_fallthru
          _
        // Predicated region
        $region25: #{tpu_custom_call.1} parent=11 // pred_check
          %p198 = pneg %p128
        $region26: #{tpu_custom_call.1} parent=11 // pred_check_branch
          %200 = sbr.rel (%p198) target = $region28
        $region27: #{tpu_custom_call.1} parent=11 // pred_region
          _
        $region28: #{tpu_custom_call.1} parent=11 // pred_fallthru
          _
      $region12: #{tpu_custom_call.1} parent=5 // pred_fallthru
        _
      %p201 = scmp.lt.s32.totalorder %s18, 2
      // Predicated region
      $region29: #{tpu_custom_call.1} parent=5 // pred_check
        %p202 = pneg %p201
      $region30: #{tpu_custom_call.1} parent=5 // pred_check_branch
        %204 = sbr.rel (%p202) target = $region32
      $region31: #{tpu_custom_call.1} parent=5 // pred_region
        // Predicated region
        $region33: #{tpu_custom_call.1} parent=31 // pred_check
          %p205 = pneg %p38
        $region34: #{tpu_custom_call.1} parent=31 // pred_check_branch
          %207 = sbr.rel (%p205) target = $region36
        $region35: #{tpu_custom_call.1} parent=31 // pred_region
          %s208 = sand.u32 %s28, 1
          %s209 = scalar_lea.sflag [#allocation3], %s208
          %s210 = sand.u32 %s28, 1
          %s211 = smul.addr %s210, 8
          %s212 = scalar_lea.vmem [#allocation2], %s211
          %s213 = smul.u32 2, %s18
          %s214 = ssub.s32 3, %s213
          %p215 = scmp.lt.s32.totalorder %s214, 2
          %s216 = scalar_select %p215, %s214, 2
          %s217 = smul.u32 64, %s216
          %s219 = ssub.s32 128, %s217
          %220 = vsyncadd %s209, %s219
          %p221 = scmp.ne.s32.totalorder 0, %s217
          %s222 = smul.addr %s213, 64
          %s223 = scalar_lea.hbm %s0, %s222
          %s224 = smul.u32 4, %s216
          %s225 = sshll.u32 %s212, 4
          %s226 = int_to_ptr.vmem [resolvable:$true] %s225
          %s227 = sshll.u32 %s224, 4
          %231 = dma.hbm_to_vmem [thread:$0]  (%p221), %s223, %s227, %s226, %s209, 64, 64, 4
        $region36: #{tpu_custom_call.1} parent=31 // pred_fallthru
          _
      $region32: #{tpu_custom_call.1} parent=5 // pred_fallthru
        _
      %p232 = scmp.le.s32.totalorder 1, %s18
      %p233 = scmp.lt.s32.totalorder %s18, 3
      %p234 = pnand %p232, %p233
      %p235 = pneg %p234
      // Predicated region
      $region37: #{tpu_custom_call.1} parent=5 // pred_check
        _
      $region38: #{tpu_custom_call.1} parent=5 // pred_check_branch
        %237 = sbr.rel (%p234) target = $region40
      $region39: #{tpu_custom_call.1} parent=5 // pred_region
        %s238 = ssub.s32 %s18, 1
        %s239 = sand.u32 %s31, 1
        %s240 = scalar_lea.sflag [#allocation3], %s239
        %s241 = sand.u32 %s31, 1
        %s242 = smul.addr %s241, 8
        %s243 = scalar_lea.vmem [#allocation2], %s242
        // Predicated region
        $region41: #{tpu_custom_call.1} parent=39 // pred_check
          %p244 = pneg %p44
        $region42: #{tpu_custom_call.1} parent=39 // pred_check_branch
          %246 = sbr.rel (%p244) target = $region44
        $region43: #{tpu_custom_call.1} parent=39 // pred_region
          %247 = dma.done %s240, 128
        $region44: #{tpu_custom_call.1} parent=39 // pred_fallthru
          _
        // Predicated region
        $region45: #{tpu_custom_call.1} parent=39 // pred_check
          %p248 = pneg %p65
        $region46: #{tpu_custom_call.1} parent=39 // pred_check_branch
          %250 = sbr.rel (%p248) target = $region48
        $region47: #{tpu_custom_call.1} parent=39 // pred_region
          %251 = dma.done [#allocation6], 1024
        $region48: #{tpu_custom_call.1} parent=39 // pred_fallthru
          _
        // Predicated region
        $region49: #{tpu_custom_call.1} parent=39 // pred_check
          %p252 = pneg %p107
        $region50: #{tpu_custom_call.1} parent=39 // pred_check_branch
          %254 = sbr.rel (%p252) target = $region52
        $region51: #{tpu_custom_call.1} parent=39 // pred_region
          %255 = dma.done [#allocation6], 1024
        $region52: #{tpu_custom_call.1} parent=39 // pred_fallthru
          _
        %s256 = sand.u32 %s31, 1
        %s257 = scalar_lea.sflag [#allocation3], %s256
        %s258 = sand.u32 %s31, 1
        %s259 = smul.addr %s258, 8
        %s260 = scalar_lea.vmem [#allocation2], %s259
        %p261 = pneg %p44
        %p262 = pneg %p41
        %p263 = pneg %p65
        %p264 = pneg %p62
        %p265 = pneg %p86
        %p266 = pneg %p83
        %p267 = pneg %p107
        %p268 = pneg %p104
        %p269 = pneg %p128
        %p270 = pneg %p125
        %p271 = pneg %p154
        %p272 = pneg %p151
        %s273 = sand.u32 %s141, 1
        %s274 = scalar_lea.sflag [#allocation4], %s273
        %s275 = sand.u32 %s141, 1
        %s276 = smul.addr %s275, 16
        %s277 = scalar_lea.vmem [#allocation8], %s276
        %s278 = smul.u32 2, %s23
        %s279 = ssub.s32 3, %s278
        %p280 = scmp.lt.s32.totalorder %s279, 2
        %s281 = scalar_select %p280, %s279, 2
        %s282 = smul.u32 64, %s281
        %s283 = smul.u32 2, %s23
        %s284 = ssub.s32 3, %s283
        %p285 = scmp.lt.s32.totalorder %s284, 2
        %s286 = scalar_select %p285, %s284, 2
        %s287 = smul.u32 128, %s286
        %v289 = vld [vmem:[%s243] sm:$0xf]
        %v290 = vld [vmem:[%s243 + $0x4] sm:$0xf]
        %v291 = vld [vmem:[#allocation5] sm:$0xff]
        %v292 = vld [vmem:[#allocation5 + $0x8] sm:$0xff]
        %v293 = vld [vmem:[#allocation5 + $0x10] sm:$0xff]
        %v294 = vld [vmem:[#allocation5 + $0x18] sm:$0xff]
        %v295 = vld [vmem:[#allocation5 + $0x20] sm:$0xff]
        %v296 = vld [vmem:[#allocation5 + $0x28] sm:$0xff]
        %v297 = vld [vmem:[#allocation5 + $0x30] sm:$0xff]
        %v298 = vld [vmem:[#allocation5 + $0x38] sm:$0xff]
        %v299 = vld [vmem:[%s2] sm:$0x3]
        %v301 = vlaneseq
        %v302 = vshrl.u32 %v301, 7
        %v303 = vsub.s32 0, %v302
        %v304 = vrot.slane %v299, %v303
        %v305 = vlaneseq
        %v306 = vshrl.u32 %v305, 7
        %v307 = vsub.s32 1, %v306
        %v308 = vrot.slane %v299, %v307
        %v313 = vunpack.c.l.b16 %v289
        %v314 = vunpack.c.l.b16 %v290
        %v315 = vpack.c.b16 %v314, %v313
        %v324 = vunpack.c.l.b16 %v291
        %v325 = vunpack.c.h.b16 %v291
        %v326 = vunpack.c.l.b16 %v292
        %v327 = vunpack.c.h.b16 %v292
        %v328 = vunpack.c.l.b16 %v293
        %v329 = vunpack.c.h.b16 %v293
        %v330 = vunpack.c.l.b16 %v294
        %v331 = vunpack.c.h.b16 %v294
        %v332 = vunpack.c.l.b16 %v295
        %v333 = vunpack.c.h.b16 %v295
        %v334 = vunpack.c.l.b16 %v296
        %v335 = vunpack.c.h.b16 %v296
        %v336 = vunpack.c.l.b16 %v297
        %v337 = vunpack.c.h.b16 %v297
        %v338 = vunpack.c.l.b16 %v298
        %v339 = vunpack.c.h.b16 %v298
        %v340 = vpack.c.b16 %v326, %v324
        %v341 = vpack.c.b16 %v327, %v325
        %v342 = vpack.c.b16 %v330, %v328
        %v343 = vpack.c.b16 %v331, %v329
        %v344 = vpack.c.b16 %v334, %v332
        %v345 = vpack.c.b16 %v335, %v333
        %v346 = vpack.c.b16 %v338, %v336
        %v347 = vpack.c.b16 %v339, %v337
        %vm356 = vcmask 523264
        %v358 = vsel %vm356, %v315, 0
        %360 = vmatprep.subr.bf16.mxu0 %v341
        %361 = vmatpush1.bf16.msra.mxu0 %v340
        %362 = vmatprep.subr.bf16.mxu0 %v343
        %363 = vmatpush1.bf16.msra.mxu0 %v342
        %364 = vmatprep.subr.bf16.mxu0 %v345
        %365 = vmatpush1.bf16.msra.mxu0 %v344
        %366 = vmatprep.subr.bf16.mxu0 %v347
        %367 = vmatpush1.bf16.msra.mxu0 %v346
        %368 = vmatprep.subr.bf16.mxu0 0
        %369 = vmatpush1.bf16.msra.mxu0 0
        %370 = vmatprep.subr.bf16.mxu0 0
        %371 = vmatpush1.bf16.msra.mxu0 0
        %372 = vmatprep.subr.bf16.mxu0 0
        %373 = vmatpush1.bf16.msra.mxu0 0
        %374 = vmatprep.subr.bf16.mxu0 0
        %375 = vmatpush1.bf16.msra.mxu0 0
        %376 = vmatprep.subr.bf16.mxu0 0
        %377 = vmatpush1.bf16.msra.mxu0 0
        %378 = vmatprep.subr.bf16.mxu0 0
        %379 = vmatpush1.bf16.msra.mxu0 0
        %380 = vmatprep.subr.bf16.mxu0 0
        %381 = vmatpush1.bf16.msra.mxu0 0
        %382 = vmatprep.subr.bf16.mxu0 0
        %383 = vmatpush1.bf16.msra.mxu0 0
        %384 = vmatprep.subr.bf16.mxu0 0
        %385 = vmatpush1.bf16.msra.mxu0 0
        %386 = vmatprep.subr.bf16.mxu0 0
        %387 = vmatpush1.bf16.msra.mxu0 0
        %388 = vmatprep.subr.bf16.mxu0 0
        %389 = vmatpush1.bf16.msra.mxu0 0
        %390 = vmatprep.subr.bf16.mxu0 0
        %391 = vmatpush1.bf16.msra.mxu0 0
        %392 = vmatprep.mubr.bf16.mxu0 0
        %393 = vmatmul.mubr.bf16.gmra.mrb[0].mxu0 %v358
        %v394 = vpop.f32.mrb[0].mxu0
        %v395 = vadd.f32 %v304, %v394
        %v396 = vpop.f32.mrb[0].mxu0
        %v397 = vadd.f32 %v308, %v396
        %v398 = vpop.f32.mrb[0].mxu0
        %v399 = vadd.f32 %v304, %v398
        %v400 = vpop.f32.mrb[0].mxu0
        %v401 = vadd.f32 %v308, %v400
        %402 = vdwg.mxu0
        %v403 = vtanh.pop %v395
        %v404 = vtanh.pop %v399
        %v405 = vxor.u32 %v397, 2147483648
        %v406 = vxor.u32 %v401, 2147483648
        %v407 = vmul.f32 %v405, 1.442695
        %v408 = vpow.pop %v407
        %v409 = vmul.f32 %v406, 1.442695
        %v410 = vpow.pop %v409
        %v411 = vadd.f32 %v408, 1.0
        %v412 = vadd.f32 %v410, 1.0
        %v413 = vrcp.pop %v411
        %v414 = vmul.f32 1.0, %v413
        %v415 = vrcp.pop %v412
        %v416 = vmul.f32 1.0, %v415
        %v417 = vmul.f32 %v403, %v414
        %v418 = vmul.f32 %v404, %v416
        %v419 = vmul.f32 %v417, %v417
        %v420 = vmul.f32 %v418, %v418
        %421 = vadd.xlane.f32.xlu0 %v419
        %v422 = vpop.xlane.xlu0 %421
        %423 = vadd.xlane.f32.xlu0 %v420
        %v424 = vpop.xlane.xlu0 %423
        %v425 = vpack.c.bf16 %v418, %v417
        %v426 = vld [vmem:[#allocation7] sm:$0xf]
        %v427 = vld [vmem:[#allocation7 + $0x4] sm:$0xf]
        %v428 = vld [vmem:[#allocation7 + $0x8] sm:$0xf]
        %v429 = vld [vmem:[#allocation7 + $0xc] sm:$0xf]
        %v430 = vld [vmem:[#allocation7 + $0x10] sm:$0xf]
        %v431 = vld [vmem:[#allocation7 + $0x14] sm:$0xf]
        %v432 = vld [vmem:[#allocation7 + $0x18] sm:$0xf]
        %v433 = vld [vmem:[#allocation7 + $0x1c] sm:$0xf]
        %v434 = vld [vmem:[#allocation7 + $0x20] sm:$0xf]
        %v435 = vld [vmem:[#allocation7 + $0x24] sm:$0xf]
        %v436 = vld [vmem:[#allocation7 + $0x28] sm:$0xf]
        %v437 = vld [vmem:[#allocation7 + $0x2c] sm:$0xf]
        %v438 = vld [vmem:[#allocation7 + $0x30] sm:$0xf]
        %v439 = vld [vmem:[#allocation7 + $0x34] sm:$0xf]
        %v440 = vld [vmem:[#allocation7 + $0x38] sm:$0xf]
        %v441 = vld [vmem:[#allocation7 + $0x3c] sm:$0xf]
        %v458 = vunpack.c.l.b16 %v426
        %v459 = vunpack.c.l.b16 %v427
        %v460 = vunpack.c.l.b16 %v428
        %v461 = vunpack.c.l.b16 %v429
        %v462 = vunpack.c.l.b16 %v430
        %v463 = vunpack.c.l.b16 %v431
        %v464 = vunpack.c.l.b16 %v432
        %v465 = vunpack.c.l.b16 %v433
        %v466 = vunpack.c.l.b16 %v434
        %v467 = vunpack.c.l.b16 %v435
        %v468 = vunpack.c.l.b16 %v436
        %v469 = vunpack.c.l.b16 %v437
        %v470 = vunpack.c.l.b16 %v438
        %v471 = vunpack.c.l.b16 %v439
        %v472 = vunpack.c.l.b16 %v440
        %v473 = vunpack.c.l.b16 %v441
        %v474 = vpack.c.b16 %v459, %v458
        %v475 = vpack.c.b16 %v461, %v460
        %v476 = vpack.c.b16 %v463, %v462
        %v477 = vpack.c.b16 %v465, %v464
        %v478 = vpack.c.b16 %v467, %v466
        %v479 = vpack.c.b16 %v469, %v468
        %v480 = vpack.c.b16 %v471, %v470
        %v481 = vpack.c.b16 %v473, %v472
        %490 = vmatprep.subr.bf16.mxu0 0
        %491 = vmatpush1.bf16.msra.mxu0 %v474
        %492 = vmatprep.subr.bf16.mxu0 0
        %493 = vmatpush1.bf16.msra.mxu0 %v475
        %494 = vmatprep.subr.bf16.mxu0 0
        %495 = vmatpush1.bf16.msra.mxu0 %v476
        %496 = vmatprep.subr.bf16.mxu0 0
        %497 = vmatpush1.bf16.msra.mxu0 %v477
        %498 = vmatprep.subr.bf16.mxu0 0
        %499 = vmatpush1.bf16.msra.mxu0 %v478
        %500 = vmatprep.subr.bf16.mxu0 0
        %501 = vmatpush1.bf16.msra.mxu0 %v479
        %502 = vmatprep.subr.bf16.mxu0 0
        %503 = vmatpush1.bf16.msra.mxu0 %v480
        %504 = vmatprep.subr.bf16.mxu0 0
        %505 = vmatpush1.bf16.msra.mxu0 %v481
        %506 = vmatprep.subr.bf16.mxu0 0
        %507 = vmatpush1.bf16.msra.mxu0 0
        %508 = vmatprep.subr.bf16.mxu0 0
        %509 = vmatpush1.bf16.msra.mxu0 0
        %510 = vmatprep.subr.bf16.mxu0 0
        %511 = vmatpush1.bf16.msra.mxu0 0
        %512 = vmatprep.subr.bf16.mxu0 0
        %513 = vmatpush1.bf16.msra.mxu0 0
        %514 = vmatprep.subr.bf16.mxu0 0
        %515 = vmatpush1.bf16.msra.mxu0 0
        %516 = vmatprep.subr.bf16.mxu0 0
        %517 = vmatpush1.bf16.msra.mxu0 0
        %518 = vmatprep.subr.bf16.mxu0 0
        %519 = vmatpush1.bf16.msra.mxu0 0
        %520 = vmatprep.subr.bf16.mxu0 0
        %521 = vmatpush1.bf16.msra.mxu0 0
        %522 = vmatprep.mubr.bf16.mxu0 0
        %523 = vmatmul.mubr.bf16.gmra.mrb[0].mxu0 %v425
        %v524 = vpop.f32.mrb[0].mxu0
        %v525 = vadd.f32 0.0, %v524
        %v526 = vpop.f32.mrb[0].mxu0
        %v527 = vpop.f32.mrb[0].mxu0
        %v528 = vadd.f32 0.0, %v527
        %v529 = vpop.f32.mrb[0].mxu0
        %530 = vdwg.mxu0
        %v531 = vmax.f32 %v422, 1e-24
        %v532 = vmax.f32 %v424, 1e-24
        %v533 = vrsqrt.pop %v531
        %v534 = vrsqrt.pop %v532
        %v535 = vmul.f32 %v525, %v533
        %v536 = vmul.f32 %v528, %v534
        %v537 = vld [vmem:[%s4] sm:$0x1]
        %v539 = vlaneseq
        %v540 = vshrl.u32 %v539, 7
        %v541 = vsub.s32 0, %v540
        %v542 = vrot.slane %v537, %v541
        %v544 = vadd.f32 %v535, %v542
        %v545 = vadd.f32 %v536, %v542
        %546 = vst [vmem:[%s277] sm:$0xff] %v544
        %547 = vst [vmem:[%s277 + $0x8] sm:$0xff] %v545
        %s548 = sand.u32 %s141, 1
        %s549 = scalar_lea.sflag [#allocation4], %s548
        %s550 = sand.u32 %s141, 1
        %s551 = smul.addr %s550, 16
        %s552 = scalar_lea.vmem [#allocation8], %s551
        // Predicated region
        $region53: #{tpu_custom_call.1} parent=39 // pred_check
          %p553 = pneg %p151
        $region54: #{tpu_custom_call.1} parent=39 // pred_check_branch
          %555 = sbr.rel (%p553) target = $region56
        $region55: #{tpu_custom_call.1} parent=39 // pred_region
          %s556 = smul.u32 2, %s23
          %s557 = ssub.s32 3, %s556
          %p558 = scmp.lt.s32.totalorder %s557, 2
          %s559 = scalar_select %p558, %s557, 2
          %s560 = smul.u32 128, %s559
          %s562 = ssub.s32 256, %s560
          %563 = vsyncadd %s549, %s562
          %p564 = scmp.ne.s32.totalorder 0, %s560
          %s565 = smul.addr %s556, 128
          %s566 = scalar_lea.hbm %s5, %s565
          %s567 = smul.u32 8, %s559
          %s568 = sshll.u32 %s552, 4
          %s569 = int_to_ptr.vmem [resolvable:$true] %s568
          %s570 = sshll.u32 %s567, 4
          %574 = dma.vmem_to_hbm [thread:$0]  (%p564), %s569, %s570, %s566, %s549, 128, 128, 8
        $region56: #{tpu_custom_call.1} parent=39 // pred_fallthru
          _
      $region40: #{tpu_custom_call.1} parent=5 // pred_fallthru
        _
      %p575 = scmp.le.s32.totalorder 2, %s18
      // Predicated region
      $region57: #{tpu_custom_call.1} parent=5 // pred_check
        %p576 = pneg %p575
      $region58: #{tpu_custom_call.1} parent=5 // pred_check_branch
        %578 = sbr.rel (%p576) target = $region60
      $region59: #{tpu_custom_call.1} parent=5 // pred_region
        %s579 = ssub.s32 %s18, 2
        // Predicated region
        $region61: #{tpu_custom_call.1} parent=59 // pred_check
          %p580 = pneg %p157
        $region62: #{tpu_custom_call.1} parent=59 // pred_check_branch
          %582 = sbr.rel (%p580) target = $region64
        $region63: #{tpu_custom_call.1} parent=59 // pred_region
          %s583 = sand.u32 %s142, 1
          %s584 = scalar_lea.sflag [#allocation4], %s583
          %s585 = sand.u32 %s142, 1
          %s586 = smul.addr %s585, 16
          %s587 = scalar_lea.vmem [#allocation8], %s586
          %588 = dma.done %s584, 256
        $region64: #{tpu_custom_call.1} parent=59 // pred_fallthru
          _
      $region60: #{tpu_custom_call.1} parent=5 // pred_fallthru
        _
    $region6: #{tpu_custom_call.1} parent=1 // loop_footer
      %s22 = sadd.s32 1, %s18
    $region7: #{tpu_custom_call.1} parent=1 // loop_footer_branch
      %17 = sbr.rel target = $region3
    $region8: #{tpu_custom_call.1} parent=1 // loop_exit
      _
    %589 = vsyncpa [#allocation3], 1
    %s590 = scalar_lea.sflag [#allocation3], 1
    %591 = vsyncpa %s590, 1
    %592 = vsyncpa [#allocation6], 1
    %593 = vsyncpa [#allocation4], 1
    %s594 = scalar_lea.sflag [#allocation4], 1
    %595 = vsyncpa %s594, 1

</llo_original>
